<compile_context>
chip_gen: v7x
topology: tpu7x:2x2x1
jax: 0.10.0
libtpu: 0.0.40
codegen_flags: <defaults>
</compile_context>

<pallas_src>
import jax
import jax.numpy as jnp
from jax.experimental import pallas as pl
from jax.experimental.pallas import tpu as pltpu


def _round_up(x, m):
    return (x + m - 1) // m * m


def _choose_tm(B, tm_cap):
    """Batch tile: multiple of 8 (sublane), bounded padding, >=2 steps when useful."""
    n_steps = max(pl.cdiv(B, tm_cap), 1)
    # v7x has 2 TensorCores; "parallel" only helps with >=2 grid steps.  Force 2
    # steps whenever there are at least two full sublane groups of rows.
    if n_steps < 2 and B >= 16:
        n_steps = 2
    tm = _round_up(pl.cdiv(B, n_steps), 8)
    return min(tm, _round_up(B, 8))


def _mlp_kernel(x_ref, w1_ref, b1_ref, w2_ref, b2_ref, o_ref):
    # Cast the streamed f32 x tile to bf16 in-kernel (cheap VPU pack, hides under DMA).
    x = x_ref[...].astype(jnp.bfloat16)
    # hidden = relu(x @ W1 + b1): MXU matmul (bf16 in, f32 acc); bias + relu on VPU.
    h = jnp.dot(x, w1_ref[...], preferred_element_type=jnp.float32)
    h = jnp.maximum(h + b1_ref[...], 0.0)
    # out = hidden @ W2 + b2 (hidden recast to bf16 for the MXU; never touches HBM).
    y = jnp.dot(h.astype(w2_ref.dtype), w2_ref[...], preferred_element_type=jnp.float32)
    o_ref[...] = (y + b2_ref[...]).astype(o_ref.dtype)


def normal_forward(x, w1, b1, w2, b2, input_n, *, tm=1024):
    # glue: PyTorch's tmp.view(-1, self.inputs)
    assert x.size % input_n == 0, "x.size must be divisible by input_n (mirrors .view contract)"
    xf = x.reshape(-1, input_n)
    B = xf.shape[0]
    hidden_n = w1.shape[1]
    output_n = w2.shape[1]

    TM = _choose_tm(B, tm)
    grid = (pl.cdiv(B, TM),)

    # Resident weights: cast to bf16 once (tiny, stay in VMEM across the whole grid).
    w1b = w1.astype(jnp.bfloat16)
    w2b = w2.astype(jnp.bfloat16)
    b1f = b1.reshape(1, hidden_n).astype(jnp.float32)
    b2f = b2.reshape(1, output_n).astype(jnp.float32)

    # VMEM guard for the resident-weight scheme (explicit, instead of a silent v7x OOM):
    #   bf16 weights (default double-buffered) + f32 biases + double-buffered x/out
    #   tiles + the f32 hidden intermediate must fit the scoped budget.
    vmem_need = (
        2 * 2 * (input_n * hidden_n + hidden_n * output_n)   # bf16 W1/W2, 2 buffers each
        + 2 * 4 * (hidden_n + output_n)                       # f32 b1/b2, 2 buffers each
        + 2 * TM * input_n * 4                                # x tile, double-buffered
        + 2 * TM * output_n * 4                               # out tile, double-buffered
        + TM * hidden_n * 4                                   # f32 hidden intermediate
    )
    assert vmem_need <= 48 * 1024 * 1024, (
        "resident-weight path exceeds the VMEM budget; tile hidden_n/input_n instead")
    # TODO(synk): add a K/N-tiled accumulator-grid fallback for layer dims that trip the
    #             guard above (and single-buffer the resident weights via pl.Buffered(1)).

    out = pl.pallas_call(
        _mlp_kernel,
        out_shape=jax.ShapeDtypeStruct((B, output_n), jnp.float32),
        grid=grid,
        in_specs=[
            pl.BlockSpec((TM, input_n), lambda i: (i, 0)),          # streamed f32 x tile
            pl.BlockSpec((input_n, hidden_n), lambda i: (0, 0)),    # resident W1 (bf16)
            pl.BlockSpec((1, hidden_n), lambda i: (0, 0)),          # resident b1 (f32)
            pl.BlockSpec((hidden_n, output_n), lambda i: (0, 0)),   # resident W2 (bf16)
            pl.BlockSpec((1, output_n), lambda i: (0, 0)),          # resident b2 (f32)
        ],
        out_specs=pl.BlockSpec((TM, output_n), lambda i: (i, 0)),   # unpadded output
        compiler_params=pltpu.CompilerParams(
            dimension_semantics=("parallel",),          # megacore sharding on v7x
            vmem_limit_bytes=48 * 1024 * 1024,          # headroom below v7x 64 MiB
        ),
    )(xf, w1b, b1f, w2b, b2f)

    return out.astype(x.dtype)


def init_linear_params(key, fan_in, fan_out, dtype=jnp.float32):
    # deterministic PyTorch-style init: U(-1/sqrt(fan_in), 1/sqrt(fan_in))
    kw, kb = jax.random.split(key)
    bound = 1.0 / (fan_in ** 0.5)
    w = jax.random.uniform(kw, (fan_in, fan_out), dtype, -bound, bound)
    b = jax.random.uniform(kb, (fan_out,), dtype, -bound, bound)
    return w, b


if __name__ == "__main__":
    INPUT_N, HIDDEN_N, OUTPUT_N = 64, 128, 32

    key = jax.random.PRNGKey(0)
    kx, k1, k2 = jax.random.split(key, 3)

    # x with extra leading dims to exercise .view(-1, input_n) flattening:
    # (4, 5, 64) has 1280 elements -> flattens to (20, 64); B=20 exercises both the
    # forced 2-step grid (v7x megacore path) and a ragged last batch tile.
    x = jax.random.normal(kx, (4, 5, 64), dtype=jnp.float32)
    B = x.size // INPUT_N

    w1, b1 = init_linear_params(k1, INPUT_N, HIDDEN_N)
    w2, b2 = init_linear_params(k2, HIDDEN_N, OUTPUT_N)

    out = normal_forward(x, w1, b1, w2, b2, INPUT_N)
    out = jax.block_until_ready(out)
    assert out.shape == (B, OUTPUT_N)

    # reference with the same bf16-in / f32-accumulate precision path as the kernel
    xf = x.reshape(-1, INPUT_N)
    h_ref = jnp.dot(xf.astype(jnp.bfloat16), w1.astype(jnp.bfloat16),
                    preferred_element_type=jnp.float32) + b1
    h_ref = jnp.maximum(h_ref, 0.0)
    ref = jnp.dot(h_ref.astype(jnp.bfloat16), w2.astype(jnp.bfloat16),
                  preferred_element_type=jnp.float32) + b2
    assert jnp.allclose(out, ref, atol=2e-3, rtol=2e-3)

    # loose sanity check against full-f32 math (bf16 quantization noise only)
    ref32 = jnp.maximum(xf @ w1 + b1, 0.0) @ w2 + b2
    assert jnp.allclose(out, ref32, atol=1e-1, rtol=1e-1)

    print("KERNEL_OK")
</pallas_src>

<mosaic_0001>
module attributes {stable_mosaic.version = 11 : i64} {
  func.func @_mlp_kernel(%arg0: i32, %arg1: memref<16x64xf32, #tpu.memory_space<vmem>>, %arg2: memref<64x128xbf16, #tpu.memory_space<vmem>>, %arg3: memref<1x128xf32, #tpu.memory_space<vmem>>, %arg4: memref<128x32xbf16, #tpu.memory_space<vmem>>, %arg5: memref<1x32xf32, #tpu.memory_space<vmem>>, %arg6: memref<16x32xf32, #tpu.memory_space<vmem>>) attributes {dimension_semantics = [#tpu.dimension_semantics<parallel>], iteration_bounds = array<i64: 2>, scalar_prefetch = 0 : i64, scratch_operands = 0 : i64, tpu.core_type = #tpu.core_type<tc>, window_params = [{transform_indices = @transform_0, window_bounds = array<i64: 16, 64>}, {pipeline_mode = #tpu.pipeline_mode<synchronous>, transform_indices = @transform_1, window_bounds = array<i64: 64, 128>}, {pipeline_mode = #tpu.pipeline_mode<synchronous>, transform_indices = @transform_2, window_bounds = array<i64: 1, 128>}, {pipeline_mode = #tpu.pipeline_mode<synchronous>, transform_indices = @transform_3, window_bounds = array<i64: 128, 32>}, {pipeline_mode = #tpu.pipeline_mode<synchronous>, transform_indices = @transform_4, window_bounds = array<i64: 1, 32>}, {transform_indices = @transform_5, window_bounds = array<i64: 16, 32>}]} {
    %c0 = arith.constant 0 : index
    %c0_0 = arith.constant 0 : index
    %0 = vector.load %arg1[%c0, %c0_0] : memref<16x64xf32, #tpu.memory_space<vmem>>, vector<16x64xf32>
    %1 = arith.truncf %0 : vector<16x64xf32> to vector<16x64xbf16>
    %c0_1 = arith.constant 0 : index
    %c0_2 = arith.constant 0 : index
    %2 = vector.load %arg2[%c0_1, %c0_2] : memref<64x128xbf16, #tpu.memory_space<vmem>>, vector<64x128xbf16>
    %cst = arith.constant dense<0.000000e+00> : vector<16x128xf32>
    %3 = tpu.matmul %1, %2, %cst {dimension_numbers = #tpu.dot_dimension_numbers<[1], [0], [0], [1], [0, 0, 1, 1], [], []>} : vector<16x64xbf16>, vector<64x128xbf16>, vector<16x128xf32> -> vector<16x128xf32>
    %c0_3 = arith.constant 0 : index
    %c0_4 = arith.constant 0 : index
    %4 = vector.load %arg3[%c0_3, %c0_4] : memref<1x128xf32, #tpu.memory_space<vmem>>, vector<1x128xf32>
    %5 = vector.broadcast %4 : vector<1x128xf32> to vector<16x128xf32>
    %6 = arith.addf %3, %5 : vector<16x128xf32>
    %cst_5 = arith.constant 0.000000e+00 : f32
    %7 = vector.broadcast %cst_5 : f32 to vector<16x128xf32>
    %8 = arith.maximumf %6, %7 : vector<16x128xf32>
    %9 = arith.truncf %8 : vector<16x128xf32> to vector<16x128xbf16>
    %c0_6 = arith.constant 0 : index
    %c0_7 = arith.constant 0 : index
    %10 = vector.load %arg4[%c0_6, %c0_7] : memref<128x32xbf16, #tpu.memory_space<vmem>>, vector<128x32xbf16>
    %cst_8 = arith.constant dense<0.000000e+00> : vector<16x32xf32>
    %11 = tpu.matmul %9, %10, %cst_8 {dimension_numbers = #tpu.dot_dimension_numbers<[1], [0], [0], [1], [0, 0, 1, 1], [], []>} : vector<16x128xbf16>, vector<128x32xbf16>, vector<16x32xf32> -> vector<16x32xf32>
    %c0_9 = arith.constant 0 : index
    %c0_10 = arith.constant 0 : index
    %12 = vector.load %arg5[%c0_9, %c0_10] : memref<1x32xf32, #tpu.memory_space<vmem>>, vector<1x32xf32>
    %13 = vector.broadcast %12 : vector<1x32xf32> to vector<16x32xf32>
    %14 = arith.addf %11, %13 : vector<16x32xf32>
    %c0_11 = arith.constant 0 : index
    %c0_12 = arith.constant 0 : index
    %15 = vector.load %arg6[%c0_11, %c0_12] : memref<16x32xf32, #tpu.memory_space<vmem>>, vector<16x32xf32>
    tpu.vector_store %arg6[%c0_11, %c0_12], %14 {strides = array<i32>} : memref<16x32xf32, #tpu.memory_space<vmem>>, vector<16x32xf32>,
    return
  }
  func.func @transform_0(%arg0: i32) -> (i32, i32) {
    %c0_i32 = arith.constant 0 : i32
    %c0_i32_0 = arith.constant 0 : i32
    return %arg0, %c0_i32 : i32, i32
  }
  func.func @transform_1(%arg0: i32) -> (i32, i32) {
    %c0_i32 = arith.constant 0 : i32
    %c0_i32_0 = arith.constant 0 : i32
    %c0_i32_1 = arith.constant 0 : i32
    return %c0_i32, %c0_i32_0 : i32, i32
  }
  func.func @transform_2(%arg0: i32) -> (i32, i32) {
    %c0_i32 = arith.constant 0 : i32
    %c0_i32_0 = arith.constant 0 : i32
    %c0_i32_1 = arith.constant 0 : i32
    return %c0_i32, %c0_i32_0 : i32, i32
  }
  func.func @transform_3(%arg0: i32) -> (i32, i32) {
    %c0_i32 = arith.constant 0 : i32
    %c0_i32_0 = arith.constant 0 : i32
    %c0_i32_1 = arith.constant 0 : i32
    return %c0_i32, %c0_i32_0 : i32, i32
  }
  func.func @transform_4(%arg0: i32) -> (i32, i32) {
    %c0_i32 = arith.constant 0 : i32
    %c0_i32_0 = arith.constant 0 : i32
    %c0_i32_1 = arith.constant 0 : i32
    return %c0_i32, %c0_i32_0 : i32, i32
  }
  func.func @transform_5(%arg0: i32) -> (i32, i32) {
    %c0_i32 = arith.constant 0 : i32
    %c0_i32_0 = arith.constant 0 : i32
    return %arg0, %c0_i32 : i32, i32
  }
}

</mosaic_0001>

<llo_original>
// kernel: tpu_custom_call.1
$region0: #{tpu_custom_call.1}
  #allocation0 [shape = 'u32[]', space=smem, size = 0x4, offset = 0x4, fixed_abs, tag = 'smem constant byte address 0x4 - core index']
  #allocation1 [shape = 'u32[144,128]{1,0:T(1,128)}', space=vmem, size = 0x12000, scoped, tag = 'internal scratch']
  %s0 = inlined_call_operand.vmem [shape: f32[20,64], index: 0, kind: input, shape index: {}]
  %s1 = inlined_call_operand.vmem [shape: bf16[64,128], index: 1, kind: input, shape index: {}]
  %s2 = inlined_call_operand.vmem [shape: f32[1,128], index: 2, kind: input, shape index: {}]
  %s3 = inlined_call_operand.vmem [shape: bf16[128,32], index: 3, kind: input, shape index: {}]
  %s4 = inlined_call_operand.vmem [shape: f32[1,32], index: 4, kind: input, shape index: {}]
  %s5 = inlined_call_operand.hbm [shape: f32[20,32], index: 5, kind: output, shape index: {}]
  %s6 = sld [smem:[#allocation0]]
  $region53: #{tpu_custom_call.1} parent=0
    _
  %s8 = ssub.s32 1, %s6
  %s9 = scalar_select 0, %s8, %s6
  $region1: #{tpu_custom_call.1} parent=0
    #allocation2 [shape = 'u8[16384]{0}', space=vmem, size = 0x4000, scoped, tag = 'output window, operand 0']
    #allocation3 [shape = 's32[2]{0}', space=sflag, size = 0x8, scoped, tag = 'scoped memory for tpu_custom_call.1']
    %10 = vsyncpa [#allocation3], 0
    %s11 = scalar_lea.sflag [#allocation3], 1
    %12 = vsyncpa %s11, 0
    loop: start=0, step=1, limit=4
    $region2: #{tpu_custom_call.1} parent=1 // loop_pre_header
      _
    $region3: #{tpu_custom_call.1} parent=1 // loop_header
      %s14 = sphi 0, %s18
      %p15 = scmp.ge.s32.totalorder %s14, 4
      %s24 = sphi 0, %s26
      %s27 = sphi 0, %s24
      %s28 = sphi 0, %s27
      %s44 = sphi 0, %s28
      %s48 = sphi 0, %s48
      %s50 = sphi 0, %s48
      %s51 = sphi 0, %s50
      %s65 = sphi 0, %s51
      %s69 = sphi 0, %s69
      %s71 = sphi 0, %s69
      %s72 = sphi 0, %s71
      %s86 = sphi 0, %s72
      %s90 = sphi 0, %s90
      %s92 = sphi 0, %s90
      %s93 = sphi 0, %s92
      %s107 = sphi 0, %s93
      %s111 = sphi 0, %s111
      %s113 = sphi 0, %s111
      %s114 = sphi 0, %s113
      %s128 = sphi 0, %s114
      %s134 = sphi 0, %s136
      %s137 = sphi 0, %s134
      %s138 = sphi 0, %s137
      %s154 = sphi 0, %s138
    $region4: #{tpu_custom_call.1} parent=1 // loop_header_branch
      %17 = sbr.rel (%p15) target = $region8
    $region5: #{tpu_custom_call.1} parent=1 // loop_body
      %s19 = ssub.s32 %s14, 1
      %s20 = ssub.s32 %s14, 2
      %s21 = sadd.s32 %s14, 1
      %s22 = ssub.s32 %s14, %s21
      %p23 = scmp.eq.s32.totalorder %s22, 0
      %s25 = sadd.s32 %s24, 1
      %s26 = scalar_select %p23, %s24, %s25
      %p29 = pneg %p23
      %p30 = scmp.eq.s32.totalorder %s14, 1
      %p31 = por %p29, %p30
      %p32 = scmp.ne.s32.totalorder %s24, %s27
      %p33 = scmp.eq.s32.totalorder %s14, 0
      %p34 = por %p32, %p33
      %p35 = scmp.ne.s32.totalorder %s24, %s27
      %p36 = scmp.eq.s32.totalorder %s19, 1
      %p37 = por %p35, %p36
      %p38 = scmp.ne.s32.totalorder %s27, %s28
      %p39 = scmp.eq.s32.totalorder %s19, 0
      %p40 = por %p38, %p39
      %p41 = scmp.ne.s32.totalorder %s27, %s28
      %p42 = scmp.eq.s32.totalorder %s20, 1
      %p43 = por %p41, %p42
      %p45 = scmp.ne.s32.totalorder %s28, %s44
      %p46 = scmp.eq.s32.totalorder %s20, 0
      %p47 = por %p45, %p46
      %s49 = sadd.s32 %s48, 1
      %p52 = scmp.eq.s32.totalorder %s14, 1
      %p53 = scmp.ne.s32.totalorder %s48, %s50
      %p54 = scmp.eq.s32.totalorder %s14, 0
      %p55 = por %p53, %p54
      %p56 = scmp.ne.s32.totalorder %s48, %s50
      %p57 = scmp.eq.s32.totalorder %s19, 1
      %p58 = por %p56, %p57
      %p59 = scmp.ne.s32.totalorder %s50, %s51
      %p60 = scmp.eq.s32.totalorder %s19, 0
      %p61 = por %p59, %p60
      %p62 = scmp.ne.s32.totalorder %s50, %s51
      %p63 = scmp.eq.s32.totalorder %s20, 1
      %p64 = por %p62, %p63
      %p66 = scmp.ne.s32.totalorder %s51, %s65
      %p67 = scmp.eq.s32.totalorder %s20, 0
      %p68 = por %p66, %p67
      %s70 = sadd.s32 %s69, 1
      %p73 = scmp.eq.s32.totalorder %s14, 1
      %p74 = scmp.ne.s32.totalorder %s69, %s71
      %p75 = scmp.eq.s32.totalorder %s14, 0
      %p76 = por %p74, %p75
      %p77 = scmp.ne.s32.totalorder %s69, %s71
      %p78 = scmp.eq.s32.totalorder %s19, 1
      %p79 = por %p77, %p78
      %p80 = scmp.ne.s32.totalorder %s71, %s72
      %p81 = scmp.eq.s32.totalorder %s19, 0
      %p82 = por %p80, %p81
      %p83 = scmp.ne.s32.totalorder %s71, %s72
      %p84 = scmp.eq.s32.totalorder %s20, 1
      %p85 = por %p83, %p84
      %p87 = scmp.ne.s32.totalorder %s72, %s86
      %p88 = scmp.eq.s32.totalorder %s20, 0
      %p89 = por %p87, %p88
      %s91 = sadd.s32 %s90, 1
      %p94 = scmp.eq.s32.totalorder %s14, 1
      %p95 = scmp.ne.s32.totalorder %s90, %s92
      %p96 = scmp.eq.s32.totalorder %s14, 0
      %p97 = por %p95, %p96
      %p98 = scmp.ne.s32.totalorder %s90, %s92
      %p99 = scmp.eq.s32.totalorder %s19, 1
      %p100 = por %p98, %p99
      %p101 = scmp.ne.s32.totalorder %s92, %s93
      %p102 = scmp.eq.s32.totalorder %s19, 0
      %p103 = por %p101, %p102
      %p104 = scmp.ne.s32.totalorder %s92, %s93
      %p105 = scmp.eq.s32.totalorder %s20, 1
      %p106 = por %p104, %p105
      %p108 = scmp.ne.s32.totalorder %s93, %s107
      %p109 = scmp.eq.s32.totalorder %s20, 0
      %p110 = por %p108, %p109
      %s112 = sadd.s32 %s111, 1
      %p115 = scmp.eq.s32.totalorder %s14, 1
      %p116 = scmp.ne.s32.totalorder %s111, %s113
      %p117 = scmp.eq.s32.totalorder %s14, 0
      %p118 = por %p116, %p117
      %p119 = scmp.ne.s32.totalorder %s111, %s113
      %p120 = scmp.eq.s32.totalorder %s19, 1
      %p121 = por %p119, %p120
      %p122 = scmp.ne.s32.totalorder %s113, %s114
      %p123 = scmp.eq.s32.totalorder %s19, 0
      %p124 = por %p122, %p123
      %p125 = scmp.ne.s32.totalorder %s113, %s114
      %p126 = scmp.eq.s32.totalorder %s20, 1
      %p127 = por %p125, %p126
      %p129 = scmp.ne.s32.totalorder %s114, %s128
      %p130 = scmp.eq.s32.totalorder %s20, 0
      %p131 = por %p129, %p130
      %s132 = ssub.s32 %s14, %s21
      %p133 = scmp.eq.s32.totalorder %s132, 0
      %s135 = sadd.s32 %s134, 1
      %s136 = scalar_select %p133, %s134, %s135
      %p139 = pneg %p133
      %p140 = scmp.eq.s32.totalorder %s14, 1
      %p141 = por %p139, %p140
      %p142 = scmp.ne.s32.totalorder %s134, %s137
      %p143 = scmp.eq.s32.totalorder %s14, 0
      %p144 = por %p142, %p143
      %p145 = scmp.ne.s32.totalorder %s134, %s137
      %p146 = scmp.eq.s32.totalorder %s19, 1
      %p147 = por %p145, %p146
      %p148 = scmp.ne.s32.totalorder %s137, %s138
      %p149 = scmp.eq.s32.totalorder %s19, 0
      %p150 = por %p148, %p149
      %p151 = scmp.ne.s32.totalorder %s137, %s138
      %p152 = scmp.eq.s32.totalorder %s20, 1
      %p153 = por %p151, %p152
      %p155 = scmp.ne.s32.totalorder %s138, %s154
      %p156 = scmp.eq.s32.totalorder %s20, 0
      %p157 = por %p155, %p156
      %p158 = scmp.le.s32.totalorder 1, %s14
      %p159 = scmp.lt.s32.totalorder %s14, 3
      %p160 = pnand %p158, %p159
      %p161 = pneg %p160
      // Predicated region
      $region9: #{tpu_custom_call.1} parent=5 // pred_check
        _
      $region10: #{tpu_custom_call.1} parent=5 // pred_check_branch
        %163 = sbr.rel (%p160) target = $region12
      $region11: #{tpu_custom_call.1} parent=5 // pred_region
        %s164 = ssub.s32 %s14, 1
        // Predicated region
        $region13: #{tpu_custom_call.1} parent=11 // pred_check
          %p165 = pneg %p61
        $region14: #{tpu_custom_call.1} parent=11 // pred_check_branch
          %167 = sbr.rel (%p165) target = $region16
        $region15: #{tpu_custom_call.1} parent=11 // pred_region
          _
        $region16: #{tpu_custom_call.1} parent=11 // pred_fallthru
          _
        // Predicated region
        $region17: #{tpu_custom_call.1} parent=11 // pred_check
          %p168 = pneg %p82
        $region18: #{tpu_custom_call.1} parent=11 // pred_check_branch
          %170 = sbr.rel (%p168) target = $region20
        $region19: #{tpu_custom_call.1} parent=11 // pred_region
          _
        $region20: #{tpu_custom_call.1} parent=11 // pred_fallthru
          _
        // Predicated region
        $region21: #{tpu_custom_call.1} parent=11 // pred_check
          %p171 = pneg %p103
        $region22: #{tpu_custom_call.1} parent=11 // pred_check_branch
          %173 = sbr.rel (%p171) target = $region24
        $region23: #{tpu_custom_call.1} parent=11 // pred_region
          _
        $region24: #{tpu_custom_call.1} parent=11 // pred_fallthru
          _
        // Predicated region
        $region25: #{tpu_custom_call.1} parent=11 // pred_check
          %p174 = pneg %p124
        $region26: #{tpu_custom_call.1} parent=11 // pred_check_branch
          %176 = sbr.rel (%p174) target = $region28
        $region27: #{tpu_custom_call.1} parent=11 // pred_region
          _
        $region28: #{tpu_custom_call.1} parent=11 // pred_fallthru
          _
      $region12: #{tpu_custom_call.1} parent=5 // pred_fallthru
        _
      %p177 = scmp.lt.s32.totalorder %s14, 2
      // Predicated region
      $region29: #{tpu_custom_call.1} parent=5 // pred_check
        %p178 = pneg %p177
      $region30: #{tpu_custom_call.1} parent=5 // pred_check_branch
        %180 = sbr.rel (%p178) target = $region32
      $region31: #{tpu_custom_call.1} parent=5 // pred_region
        // Predicated region
        $region33: #{tpu_custom_call.1} parent=31 // pred_check
          %p181 = pneg %p34
        $region34: #{tpu_custom_call.1} parent=31 // pred_check_branch
          %183 = sbr.rel (%p181) target = $region36
        $region35: #{tpu_custom_call.1} parent=31 // pred_region
          %s184 = smul.u32 2, %s14
          %s185 = ssub.s32 3, %s184
          %p186 = scmp.lt.s32.totalorder %s185, 2
          %s187 = scalar_select %p186, %s185, 2
          %s188 = smul.u32 128, %s187
          %p189 = scmp.lt.s32.totalorder %s184, 2
          %s190 = scalar_select %p189, %s184, 2
          %s191 = smul.addr %s190, 8
          %s192 = scalar_lea.vmem %s0, %s191
          %s193 = smul.u32 2, %s14
          %s194 = ssub.s32 3, %s193
          %p195 = scmp.lt.s32.totalorder %s194, 2
          %s196 = scalar_select %p195, %s194, 2
          %s197 = smul.u32 128, %s196
        $region36: #{tpu_custom_call.1} parent=31 // pred_fallthru
          _
      $region32: #{tpu_custom_call.1} parent=5 // pred_fallthru
        _
      %p198 = scmp.le.s32.totalorder 1, %s14
      %p199 = scmp.lt.s32.totalorder %s14, 3
      %p200 = pnand %p198, %p199
      %p201 = pneg %p200
      // Predicated region
      $region37: #{tpu_custom_call.1} parent=5 // pred_check
        _
      $region38: #{tpu_custom_call.1} parent=5 // pred_check_branch
        %203 = sbr.rel (%p200) target = $region40
      $region39: #{tpu_custom_call.1} parent=5 // pred_region
        %s204 = ssub.s32 %s14, 1
        %s205 = smul.u32 2, %s19
        %s206 = ssub.s32 3, %s205
        %p207 = scmp.lt.s32.totalorder %s206, 2
        %s208 = scalar_select %p207, %s206, 2
        %s209 = smul.u32 128, %s208
        %p210 = scmp.lt.s32.totalorder %s205, 2
        %s211 = scalar_select %p210, %s205, 2
        %s212 = smul.addr %s211, 8
        %s213 = scalar_lea.vmem %s0, %s212
        %p214 = pneg %p40
        %p215 = pneg %p37
        %p216 = pneg %p61
        %p217 = pneg %p58
        %p218 = pneg %p82
        %p219 = pneg %p79
        %p220 = pneg %p103
        %p221 = pneg %p100
        %p222 = pneg %p124
        %p223 = pneg %p121
        %p224 = pneg %p150
        %p225 = pneg %p147
        %s226 = sand.u32 %s137, 1
        %s227 = scalar_lea.sflag [#allocation3], %s226
        %s228 = sand.u32 %s137, 1
        %s229 = smul.addr %s228, 16
        %s230 = scalar_lea.vmem [#allocation2], %s229
        %s231 = smul.u32 2, %s19
        %s232 = ssub.s32 3, %s231
        %p233 = scmp.lt.s32.totalorder %s232, 2
        %s234 = scalar_select %p233, %s232, 2
        %s235 = smul.u32 128, %s234
        %p236 = scmp.lt.s32.totalorder %s231, 2
        %s237 = scalar_select %p236, %s231, 2
        %s238 = smul.addr %s237, 8
        %s239 = scalar_lea.vmem %s0, %s238
        %s240 = smul.u32 2, %s19
        %s241 = ssub.s32 3, %s240
        %p242 = scmp.lt.s32.totalorder %s241, 2
        %s243 = scalar_select %p242, %s241, 2
        %s244 = smul.u32 128, %s243
        %s245 = smul.u32 2, %s19
        %s246 = ssub.s32 3, %s245
        %p247 = scmp.lt.s32.totalorder %s246, 2
        %s248 = scalar_select %p247, %s246, 2
        %s249 = smul.u32 128, %s248
        %v251 = vld [vmem:[%s239] sm:$0xff]
        %v252 = vld [vmem:[%s239 + $0x8] sm:$0xff]
        %v253 = vpack.c.bf16 %v252, %v251
        %v254 = vld [vmem:[%s1] sm:$0xf]
        %v255 = vld [vmem:[%s1 + $0x4] sm:$0xf]
        %v256 = vld [vmem:[%s1 + $0x8] sm:$0xf]
        %v257 = vld [vmem:[%s1 + $0xc] sm:$0xf]
        %v258 = vld [vmem:[%s1 + $0x10] sm:$0xf]
        %v259 = vld [vmem:[%s1 + $0x14] sm:$0xf]
        %v260 = vld [vmem:[%s1 + $0x18] sm:$0xf]
        %v261 = vld [vmem:[%s1 + $0x1c] sm:$0xf]
        %v262 = vld [vmem:[%s2] sm:$0x1]
        %v264 = vlaneseq
        %v265 = vshrl.u32 %v264, 7
        %v266 = vsub.s32 0, %v265
        %v267 = vrot.slane %v262, %v266
        %v277 = vunpack.c.l.b16 %v254
        %v278 = vunpack.c.l.b16 %v255
        %v279 = vunpack.c.l.b16 %v256
        %v280 = vunpack.c.l.b16 %v257
        %v281 = vunpack.c.l.b16 %v258
        %v282 = vunpack.c.l.b16 %v259
        %v283 = vunpack.c.l.b16 %v260
        %v284 = vunpack.c.l.b16 %v261
        %v285 = vpack.c.b16 %v278, %v277
        %v286 = vpack.c.b16 %v280, %v279
        %v287 = vpack.c.b16 %v282, %v281
        %v288 = vpack.c.b16 %v284, %v283
        %vm293 = vcmask 523264
        %v295 = vsel %vm293, %v253, 0
        %297 = vmatprep.subr.bf16.mxu0 0
        %298 = vmatpush1.bf16.msra.mxu0 %v285
        %299 = vmatprep.subr.bf16.mxu0 0
        %300 = vmatpush1.bf16.msra.mxu0 %v286
        %301 = vmatprep.subr.bf16.mxu0 0
        %302 = vmatpush1.bf16.msra.mxu0 %v287
        %303 = vmatprep.subr.bf16.mxu0 0
        %304 = vmatpush1.bf16.msra.mxu0 %v288
        %305 = vmatprep.subr.bf16.mxu0 0
        %306 = vmatpush1.bf16.msra.mxu0 0
        %307 = vmatprep.subr.bf16.mxu0 0
        %308 = vmatpush1.bf16.msra.mxu0 0
        %309 = vmatprep.subr.bf16.mxu0 0
        %310 = vmatpush1.bf16.msra.mxu0 0
        %311 = vmatprep.subr.bf16.mxu0 0
        %312 = vmatpush1.bf16.msra.mxu0 0
        %313 = vmatprep.subr.bf16.mxu0 0
        %314 = vmatpush1.bf16.msra.mxu0 0
        %315 = vmatprep.subr.bf16.mxu0 0
        %316 = vmatpush1.bf16.msra.mxu0 0
        %317 = vmatprep.subr.bf16.mxu0 0
        %318 = vmatpush1.bf16.msra.mxu0 0
        %319 = vmatprep.subr.bf16.mxu0 0
        %320 = vmatpush1.bf16.msra.mxu0 0
        %321 = vmatprep.subr.bf16.mxu0 0
        %322 = vmatpush1.bf16.msra.mxu0 0
        %323 = vmatprep.subr.bf16.mxu0 0
        %324 = vmatpush1.bf16.msra.mxu0 0
        %325 = vmatprep.subr.bf16.mxu0 0
        %326 = vmatpush1.bf16.msra.mxu0 0
        %327 = vmatprep.subr.bf16.mxu0 0
        %328 = vmatpush1.bf16.msra.mxu0 0
        %329 = vmatprep.mubr.bf16.mxu0 0
        %330 = vmatmul.mubr.bf16.gmra.mrb[0].mxu0 %v295
        %v331 = vpop.f32.mrb[0].mxu0
        %v332 = vadd.f32 %v267, %v331
        %v333 = vpop.f32.mrb[0].mxu0
        %v334 = vpop.f32.mrb[0].mxu0
        %v335 = vadd.f32 %v267, %v334
        %v336 = vpop.f32.mrb[0].mxu0
        %337 = vdwg.mxu0
        %v338 = vmax.f32 %v332, 0.0
        %v339 = vmax.f32 %v335, 0.0
        %v340 = vpack.c.bf16 %v339, %v338
        %v341 = vld [vmem:[%s3] sm:$0xf]
        %v342 = vld [vmem:[%s3 + $0x4] sm:$0xf]
        %v343 = vld [vmem:[%s3 + $0x8] sm:$0xf]
        %v344 = vld [vmem:[%s3 + $0xc] sm:$0xf]
        %v345 = vld [vmem:[%s3 + $0x10] sm:$0xf]
        %v346 = vld [vmem:[%s3 + $0x14] sm:$0xf]
        %v347 = vld [vmem:[%s3 + $0x18] sm:$0xf]
        %v348 = vld [vmem:[%s3 + $0x1c] sm:$0xf]
        %v349 = vld [vmem:[%s3 + $0x20] sm:$0xf]
        %v350 = vld [vmem:[%s3 + $0x24] sm:$0xf]
        %v351 = vld [vmem:[%s3 + $0x28] sm:$0xf]
        %v352 = vld [vmem:[%s3 + $0x2c] sm:$0xf]
        %v353 = vld [vmem:[%s3 + $0x30] sm:$0xf]
        %v354 = vld [vmem:[%s3 + $0x34] sm:$0xf]
        %v355 = vld [vmem:[%s3 + $0x38] sm:$0xf]
        %v356 = vld [vmem:[%s3 + $0x3c] sm:$0xf]
        %v357 = vld [vmem:[%s4] sm:$0x1]
        %v359 = vlaneseq
        %v360 = vshrl.u32 %v359, 7
        %v361 = vsub.s32 0, %v360
        %v362 = vrot.slane %v357, %v361
        %v380 = vunpack.c.l.b16 %v341
        %v381 = vunpack.c.l.b16 %v342
        %v382 = vunpack.c.l.b16 %v343
        %v383 = vunpack.c.l.b16 %v344
        %v384 = vunpack.c.l.b16 %v345
        %v385 = vunpack.c.l.b16 %v346
        %v386 = vunpack.c.l.b16 %v347
        %v387 = vunpack.c.l.b16 %v348
        %v388 = vunpack.c.l.b16 %v349
        %v389 = vunpack.c.l.b16 %v350
        %v390 = vunpack.c.l.b16 %v351
        %v391 = vunpack.c.l.b16 %v352
        %v392 = vunpack.c.l.b16 %v353
        %v393 = vunpack.c.l.b16 %v354
        %v394 = vunpack.c.l.b16 %v355
        %v395 = vunpack.c.l.b16 %v356
        %v396 = vpack.c.b16 %v381, %v380
        %v397 = vpack.c.b16 %v383, %v382
        %v398 = vpack.c.b16 %v385, %v384
        %v399 = vpack.c.b16 %v387, %v386
        %v400 = vpack.c.b16 %v389, %v388
        %v401 = vpack.c.b16 %v391, %v390
        %v402 = vpack.c.b16 %v393, %v392
        %v403 = vpack.c.b16 %v395, %v394
        %412 = vmatprep.subr.bf16.mxu0 0
        %413 = vmatpush1.bf16.msra.mxu0 %v396
        %414 = vmatprep.subr.bf16.mxu0 0
        %415 = vmatpush1.bf16.msra.mxu0 %v397
        %416 = vmatprep.subr.bf16.mxu0 0
        %417 = vmatpush1.bf16.msra.mxu0 %v398
        %418 = vmatprep.subr.bf16.mxu0 0
        %419 = vmatpush1.bf16.msra.mxu0 %v399
        %420 = vmatprep.subr.bf16.mxu0 0
        %421 = vmatpush1.bf16.msra.mxu0 %v400
        %422 = vmatprep.subr.bf16.mxu0 0
        %423 = vmatpush1.bf16.msra.mxu0 %v401
        %424 = vmatprep.subr.bf16.mxu0 0
        %425 = vmatpush1.bf16.msra.mxu0 %v402
        %426 = vmatprep.subr.bf16.mxu0 0
        %427 = vmatpush1.bf16.msra.mxu0 %v403
        %428 = vmatprep.subr.bf16.mxu0 0
        %429 = vmatpush1.bf16.msra.mxu0 0
        %430 = vmatprep.subr.bf16.mxu0 0
        %431 = vmatpush1.bf16.msra.mxu0 0
        %432 = vmatprep.subr.bf16.mxu0 0
        %433 = vmatpush1.bf16.msra.mxu0 0
        %434 = vmatprep.subr.bf16.mxu0 0
        %435 = vmatpush1.bf16.msra.mxu0 0
        %436 = vmatprep.subr.bf16.mxu0 0
        %437 = vmatpush1.bf16.msra.mxu0 0
        %438 = vmatprep.subr.bf16.mxu0 0
        %439 = vmatpush1.bf16.msra.mxu0 0
        %440 = vmatprep.subr.bf16.mxu0 0
        %441 = vmatpush1.bf16.msra.mxu0 0
        %442 = vmatprep.subr.bf16.mxu0 0
        %443 = vmatpush1.bf16.msra.mxu0 0
        %444 = vmatprep.mubr.bf16.mxu0 0
        %445 = vmatmul.mubr.bf16.gmra.mrb[0].mxu0 %v340
        %v446 = vpop.f32.mrb[0].mxu0
        %v447 = vadd.f32 %v362, %v446
        %v448 = vpop.f32.mrb[0].mxu0
        %v449 = vpop.f32.mrb[0].mxu0
        %v450 = vadd.f32 %v362, %v449
        %v451 = vpop.f32.mrb[0].mxu0
        %452 = vdwg.mxu0
        %vm453 = vcmask 261120
        %454 = vst.msk [vmem:[%s230] sm:$0xff] %vm453, %v447
        %455 = vst.msk [vmem:[%s230 + $0x8] sm:$0xff] %vm453, %v450
        %s456 = sand.u32 %s137, 1
        %s457 = scalar_lea.sflag [#allocation3], %s456
        %s458 = sand.u32 %s137, 1
        %s459 = smul.addr %s458, 16
        %s460 = scalar_lea.vmem [#allocation2], %s459
        // Predicated region
        $region41: #{tpu_custom_call.1} parent=39 // pred_check
          %p461 = pneg %p147
        $region42: #{tpu_custom_call.1} parent=39 // pred_check_branch
          %463 = sbr.rel (%p461) target = $region44
        $region43: #{tpu_custom_call.1} parent=39 // pred_region
          %s464 = smul.u32 2, %s19
          %s465 = ssub.s32 3, %s464
          %p466 = scmp.lt.s32.totalorder %s465, 2
          %s467 = scalar_select %p466, %s465, 2
          %s468 = smul.u32 128, %s467
          %s470 = ssub.s32 256, %s468
          %471 = vsyncadd %s457, %s470
          %p472 = scmp.ne.s32.totalorder 0, %s468
          %s473 = smul.addr %s464, 128
          %s474 = scalar_lea.hbm %s5, %s473
          %s475 = smul.u32 8, %s467
          %s476 = sshll.u32 %s460, 4
          %s477 = int_to_ptr.vmem [resolvable:$true] %s476
          %s478 = sshll.u32 %s475, 4
          %482 = dma.vmem_to_hbm [thread:$0]  (%p472), %s477, %s478, %s474, %s457, 128, 128, 8
        $region44: #{tpu_custom_call.1} parent=39 // pred_fallthru
          _
      $region40: #{tpu_custom_call.1} parent=5 // pred_fallthru
        _
      %p483 = scmp.le.s32.totalorder 2, %s14
      // Predicated region
      $region45: #{tpu_custom_call.1} parent=5 // pred_check
        %p484 = pneg %p483
      $region46: #{tpu_custom_call.1} parent=5 // pred_check_branch
        %486 = sbr.rel (%p484) target = $region48
      $region47: #{tpu_custom_call.1} parent=5 // pred_region
        %s487 = ssub.s32 %s14, 2
        // Predicated region
        $region49: #{tpu_custom_call.1} parent=47 // pred_check
          %p488 = pneg %p153
        $region50: #{tpu_custom_call.1} parent=47 // pred_check_branch
          %490 = sbr.rel (%p488) target = $region52
        $region51: #{tpu_custom_call.1} parent=47 // pred_region
          %s491 = sand.u32 %s138, 1
          %s492 = scalar_lea.sflag [#allocation3], %s491
          %s493 = sand.u32 %s138, 1
          %s494 = smul.addr %s493, 16
          %s495 = scalar_lea.vmem [#allocation2], %s494
          %496 = dma.done %s492, 256
        $region52: #{tpu_custom_call.1} parent=47 // pred_fallthru
          _
      $region48: #{tpu_custom_call.1} parent=5 // pred_fallthru
        _
    $region6: #{tpu_custom_call.1} parent=1 // loop_footer
      %s18 = sadd.s32 1, %s14
    $region7: #{tpu_custom_call.1} parent=1 // loop_footer_branch
      %13 = sbr.rel target = $region3
    $region8: #{tpu_custom_call.1} parent=1 // loop_exit
      _
    %497 = vsyncpa [#allocation3], 1
    %s498 = scalar_lea.sflag [#allocation3], 1
    %499 = vsyncpa %s498, 1

</llo_original>
